<compile_context>
chip_gen: v5e
topology: v5e:2x2
jax: 0.10.0
libtpu: 0.0.40
codegen_flags: <defaults>
</compile_context>

<pallas_src>
import jax
import jax.numpy as jnp
from jax.experimental import pallas as pl
from jax.experimental.pallas import tpu as pltpu


def _round_up(x, m):
    return (x + m - 1) // m * m


def _pick_tile(n, unit, max_tile):
    """Tile size: multiple of `unit`, <= max_tile, minimizing total padding."""
    n_u = _round_up(n, unit)
    n_tiles = -(-n_u // max_tile)
    tile = _round_up(-(-n_u // n_tiles), unit)
    return tile, n_tiles * tile


# ---------------- Phase 1: global average pool (sum-reduce over S) ----------

def _pool_kernel(x_ref, sum_ref):
    # x_ref: (rt, st); sum_ref: (rt, 1) f32, resident across the S grid axis.
    @pl.when(pl.program_id(1) == 0)
    def _():
        sum_ref[...] = jnp.zeros_like(sum_ref)

    sum_ref[...] += jnp.sum(x_ref[...].astype(jnp.float32), axis=-1, keepdims=True)


# ---------------- Phase 2: rescale x by the per-(b, c) gate -----------------

def _scale_kernel(x_ref, g_ref, o_ref):
    # x_ref/o_ref: (rt, st); g_ref: (rt, 1) already in x dtype (lane broadcast).
    o_ref[...] = x_ref[...] * g_ref[...]


def se_layer(x_nchw, w1, b1, w2, b2):
    """x_nchw: (B, C, H, W).  w1: (Ch, C), b1: (Ch,), w2: (C, Ch), b2: (C,)
    (PyTorch nn.Linear convention: weight shape = (out_features, in_features))."""
    B, C, H, W = x_nchw.shape
    S = H * W
    BC = B * C

    rt, BC_p = _pick_tile(BC, 8, 128)      # row tile over B*C
    st, S_p = _pick_tile(S, 128, 2048)     # lane tile over spatial dim

    x2 = x_nchw.reshape(BC, S)
    if BC_p != BC or S_p != S:
        x2 = jnp.pad(x2, ((0, BC_p - BC), (0, S_p - S)))   # zeros keep sums exact

    itemsize = jnp.dtype(x2.dtype).itemsize
    x_tile_bytes = rt * st * itemsize
    grid = (BC_p // rt, S_p // st)

    # ---- pooling pass ----
    sums = pl.pallas_call(
        _pool_kernel,
        out_shape=jax.ShapeDtypeStruct((BC_p, 1), jnp.float32),
        grid=grid,
        in_specs=[pl.BlockSpec((rt, st), lambda i, j: (i, j))],
        out_specs=pl.BlockSpec((rt, 1), lambda i, j: (i, 0)),
        compiler_params=pltpu.CompilerParams(
            dimension_semantics=("parallel", "arbitrary"),
            vmem_limit_bytes=int(
                min(max(2 * x_tile_bytes + (4 << 20), 16 << 20), 48 << 20)
            ),
        ),
    )(x2)

    # ---- tiny excitation MLP in plain JAX (f32) ----
    pooled = (sums[:BC, 0] / jnp.float32(S)).reshape(B, C)
    h = jnp.maximum(pooled @ w1.astype(jnp.float32).T + b1.astype(jnp.float32), 0.0)
    gate = jax.nn.sigmoid(h @ w2.astype(jnp.float32).T + b2.astype(jnp.float32))  # (B, C)
    gate = gate.astype(x2.dtype).reshape(BC, 1)
    if BC_p != BC:
        gate = jnp.pad(gate, ((0, BC_p - BC), (0, 0)))

    # ---- rescale pass ----
    out2 = pl.pallas_call(
        _scale_kernel,
        out_shape=jax.ShapeDtypeStruct((BC_p, S_p), x2.dtype),
        grid=grid,
        in_specs=[
            pl.BlockSpec((rt, st), lambda i, j: (i, j)),
            pl.BlockSpec((rt, 1), lambda i, j: (i, 0)),
        ],
        out_specs=pl.BlockSpec((rt, st), lambda i, j: (i, j)),
        compiler_params=pltpu.CompilerParams(
            dimension_semantics=("parallel", "parallel"),
            vmem_limit_bytes=int(
                min(max(4 * x_tile_bytes + (4 << 20), 16 << 20), 48 << 20)
            ),
        ),
    )(x2, gate)

    return out2[:BC, :S].reshape(B, C, H, W)


def _reference(x_nchw, w1, b1, w2, b2):
    pooled = jnp.mean(x_nchw.astype(jnp.float32), axis=(2, 3))           # (B, C)
    h = jnp.maximum(pooled @ w1.T + b1, 0.0)
    y = jax.nn.sigmoid(h @ w2.T + b2)
    return (x_nchw.astype(jnp.float32) * y[:, :, None, None]).astype(x_nchw.dtype)


if __name__ == "__main__":
    # Small shapes consistent with the module: channel=16, reduction=8 -> hidden=2
    B, C, H, W = 2, 16, 16, 16
    reduction = 8
    Ch = C // reduction

    key = jax.random.PRNGKey(0)
    kx, k1, k2, k3, k4 = jax.random.split(key, 5)
    x = jax.random.normal(kx, (B, C, H, W), dtype=jnp.float32)
    w1 = jax.random.normal(k1, (Ch, C), dtype=jnp.float32) * 0.1   # Linear(C -> Ch)
    b1 = jax.random.normal(k2, (Ch,), dtype=jnp.float32) * 0.1
    w2 = jax.random.normal(k3, (C, Ch), dtype=jnp.float32) * 0.1   # Linear(Ch -> C)
    b2 = jax.random.normal(k4, (C,), dtype=jnp.float32) * 0.1

    se_fn = jax.jit(se_layer)
    out = se_fn(x, w1, b1, w2, b2)
    out = jax.block_until_ready(out)

    ref = _reference(x, w1, b1, w2, b2)
    assert out.shape == (B, C, H, W)
    assert jnp.allclose(out, ref, atol=1e-5, rtol=1e-5), "mismatch vs reference"

    print("KERNEL_OK")
</pallas_src>

<mosaic_0001>
module attributes {stable_mosaic.version = 11 : i64} {
  func.func @_pool_kernel(%arg0: i32, %arg1: i32, %arg2: memref<32x256xf32, #tpu.memory_space<vmem>>, %arg3: memref<32x1xf32, #tpu.memory_space<vmem>>) attributes {dimension_semantics = [#tpu.dimension_semantics<parallel>, #tpu.dimension_semantics<arbitrary>], iteration_bounds = array<i64: 1, 1>, scalar_prefetch = 0 : i64, scratch_operands = 0 : i64, tpu.core_type = #tpu.core_type<tc>, window_params = [{transform_indices = @transform_0, window_bounds = array<i64: 32, 256>}, {transform_indices = @transform_1, window_bounds = array<i64: 32, 1>}]} {
    %c0_i32 = arith.constant 0 : i32
    %0 = arith.cmpi eq, %arg1, %c0_i32 : i32
    %1 = arith.extui %0 : i1 to i32
    %c0_i32_0 = arith.constant 0 : i32
    %2 = arith.cmpi ne, %1, %c0_i32_0 : i32
    scf.if %2 {
      %cst_6 = arith.constant 0.000000e+00 : f32
      %9 = vector.broadcast %cst_6 : f32 to vector<32x1xf32>
      %c0_7 = arith.constant 0 : index
      %c0_8 = arith.constant 0 : index
      %10 = vector.load %arg3[%c0_7, %c0_8] : memref<32x1xf32, #tpu.memory_space<vmem>>, vector<32x1xf32>
      tpu.vector_store %arg3[%c0_7, %c0_8], %9 {strides = array<i32>} : memref<32x1xf32, #tpu.memory_space<vmem>>, vector<32x1xf32>,
    } else {
    }
    %c0 = arith.constant 0 : index
    %c0_1 = arith.constant 0 : index
    %3 = vector.load %arg3[%c0, %c0_1] : memref<32x1xf32, #tpu.memory_space<vmem>>, vector<32x1xf32>
    %c0_2 = arith.constant 0 : index
    %c0_3 = arith.constant 0 : index
    %4 = vector.load %arg2[%c0_2, %c0_3] : memref<32x256xf32, #tpu.memory_space<vmem>>, vector<32x256xf32>
    %cst = arith.constant dense<0.000000e+00> : vector<32xf32>
    %5 = vector.multi_reduction <add>, %4, %cst [1] : vector<32x256xf32> to vector<32xf32>
    %6 = vector.shape_cast %5 : vector<32xf32> to vector<32x1xf32>
    %7 = arith.addf %3, %6 : vector<32x1xf32>
    %c0_4 = arith.constant 0 : index
    %c0_5 = arith.constant 0 : index
    %8 = vector.load %arg3[%c0_4, %c0_5] : memref<32x1xf32, #tpu.memory_space<vmem>>, vector<32x1xf32>
    tpu.vector_store %arg3[%c0_4, %c0_5], %7 {strides = array<i32>} : memref<32x1xf32, #tpu.memory_space<vmem>>, vector<32x1xf32>,
    return
  }
  func.func @transform_0(%arg0: i32, %arg1: i32) -> (i32, i32) {
    %c0_i32 = arith.constant 0 : i32
    return %arg0, %arg1 : i32, i32
  }
  func.func @transform_1(%arg0: i32, %arg1: i32) -> (i32, i32) {
    %c0_i32 = arith.constant 0 : i32
    %c0_i32_0 = arith.constant 0 : i32
    return %arg0, %c0_i32 : i32, i32
  }
}

module attributes {stable_mosaic.version = 11 : i64} {
  func.func @_scale_kernel(%arg0: i32, %arg1: i32, %arg2: memref<32x256xf32, #tpu.memory_space<vmem>>, %arg3: memref<32x1xf32, #tpu.memory_space<vmem>>, %arg4: memref<32x256xf32, #tpu.memory_space<vmem>>) attributes {dimension_semantics = [#tpu.dimension_semantics<parallel>, #tpu.dimension_semantics<parallel>], iteration_bounds = array<i64: 1, 1>, scalar_prefetch = 0 : i64, scratch_operands = 0 : i64, tpu.core_type = #tpu.core_type<tc>, window_params = [{transform_indices = @transform_0, window_bounds = array<i64: 32, 256>}, {transform_indices = @transform_1, window_bounds = array<i64: 32, 1>}, {transform_indices = @transform_2, window_bounds = array<i64: 32, 256>}]} {
    %c0 = arith.constant 0 : index
    %c0_0 = arith.constant 0 : index
    %0 = vector.load %arg2[%c0, %c0_0] : memref<32x256xf32, #tpu.memory_space<vmem>>, vector<32x256xf32>
    %c0_1 = arith.constant 0 : index
    %c0_2 = arith.constant 0 : index
    %1 = vector.load %arg3[%c0_1, %c0_2] : memref<32x1xf32, #tpu.memory_space<vmem>>, vector<32x1xf32>
    %2 = vector.broadcast %1 : vector<32x1xf32> to vector<32x256xf32>
    %3 = arith.mulf %0, %2 : vector<32x256xf32>
    %c0_3 = arith.constant 0 : index
    %c0_4 = arith.constant 0 : index
    %4 = vector.load %arg4[%c0_3, %c0_4] : memref<32x256xf32, #tpu.memory_space<vmem>>, vector<32x256xf32>
    tpu.vector_store %arg4[%c0_3, %c0_4], %3 {strides = array<i32>} : memref<32x256xf32, #tpu.memory_space<vmem>>, vector<32x256xf32>,
    return
  }
  func.func @transform_0(%arg0: i32, %arg1: i32) -> (i32, i32) {
    %c0_i32 = arith.constant 0 : i32
    return %arg0, %arg1 : i32, i32
  }
  func.func @transform_1(%arg0: i32, %arg1: i32) -> (i32, i32) {
    %c0_i32 = arith.constant 0 : i32
    %c0_i32_0 = arith.constant 0 : i32
    return %arg0, %c0_i32 : i32, i32
  }
  func.func @transform_2(%arg0: i32, %arg1: i32) -> (i32, i32) {
    %c0_i32 = arith.constant 0 : i32
    return %arg0, %arg1 : i32, i32
  }
}

</mosaic_0001>

<llo_original>
// kernel: se_layer.2
$region0: #{se_layer.2}
  #allocation0 [shape = 'u32[]', space=smem, size = 0x4, offset = 0x4, fixed_abs, tag = 'smem constant byte address 0x4 - core index']
  #allocation1 [shape = 'u32[72,128]{1,0:T(1,128)}', space=vmem, size = 0x9000, scoped, tag = 'internal scratch']
  %s0 = inlined_call_operand.vmem [shape: f32[32,256], index: 0, kind: input, shape index: {}]
  %s1 = inlined_call_operand.vmem [shape: f32[32,1], index: 1, kind: output, shape index: {}]
  %s2 = sld [smem:[#allocation0]]
  $region18: #{se_layer.2} parent=0
    _
  %s4 = ssub.s32 1, %s2
  %s5 = scalar_select 0, %s4, %s2
  // Predicated region
  $region2: #{se_layer.2} parent=0 // pred_check
    _
  $region3: #{se_layer.2} parent=0 // pred_check_branch
    %7 = sbr.rel (0) target = $region5
  $region4: #{se_layer.2} parent=0 // pred_region
    _
  $region5: #{se_layer.2} parent=0 // pred_fallthru
    _
  %p8 = scmp.eq.s32.totalorder 0, 0
  // Predicated region
  $region6: #{se_layer.2} parent=0 // pred_check
    %p9 = pneg %p8
  $region7: #{se_layer.2} parent=0 // pred_check_branch
    %11 = sbr.rel (%p9) target = $region9
  $region8: #{se_layer.2} parent=0 // pred_region
    %vm12 = vcmask 7168
    %13 = vst.msk [vmem:[%s1] sm:$0xff] %vm12, 0.0
    %14 = vst.msk [vmem:[%s1 + $0x8] sm:$0xff] %vm12, 0.0
    %15 = vst.msk [vmem:[%s1 + $0x10] sm:$0xff] %vm12, 0.0
    %16 = vst.msk [vmem:[%s1 + $0x18] sm:$0xff] %vm12, 0.0
  $region9: #{se_layer.2} parent=0 // pred_fallthru
    _
  %v17 = vld [vmem:[%s1] sm:$0xff]
  %v18 = vld [vmem:[%s1 + $0x8] sm:$0xff]
  %v19 = vld [vmem:[%s1 + $0x10] sm:$0xff]
  %v20 = vld [vmem:[%s1 + $0x18] sm:$0xff]
  %v21 = vld [vmem:[%s0] sm:$0xff]
  %v22 = vld [vmem:[%s0 + $0x8] sm:$0xff]
  %v23 = vld [vmem:[%s0 + $0x10] sm:$0xff]
  %v24 = vld [vmem:[%s0 + $0x18] sm:$0xff]
  %v25 = vld [vmem:[%s0 + $0x20] sm:$0xff]
  %v26 = vld [vmem:[%s0 + $0x28] sm:$0xff]
  %v27 = vld [vmem:[%s0 + $0x30] sm:$0xff]
  %v28 = vld [vmem:[%s0 + $0x38] sm:$0xff]
  %v29 = vadd.f32 %v21, %v22
  %30 = vadd.xlane.f32.xlu0 %v29
  %v31 = vpop.xlane.xlu0 %30
  %v32 = vadd.f32 %v23, %v24
  %33 = vadd.xlane.f32.xlu0 %v32
  %v34 = vpop.xlane.xlu0 %33
  %v35 = vadd.f32 %v25, %v26
  %36 = vadd.xlane.f32.xlu0 %v35
  %v37 = vpop.xlane.xlu0 %36
  %v38 = vadd.f32 %v27, %v28
  %39 = vadd.xlane.f32.xlu0 %v38
  %v40 = vpop.xlane.xlu0 %39
  %v41 = vadd.f32 %v17, %v31
  %v42 = vadd.f32 %v18, %v34
  %v43 = vadd.f32 %v19, %v37
  %v44 = vadd.f32 %v20, %v40
  %vm45 = vcmask 7168
  %46 = vst.msk [vmem:[%s1] sm:$0xff] %vm45, %v41
  %47 = vst.msk [vmem:[%s1 + $0x8] sm:$0xff] %vm45, %v42
  %48 = vst.msk [vmem:[%s1 + $0x10] sm:$0xff] %vm45, %v43
  %49 = vst.msk [vmem:[%s1 + $0x18] sm:$0xff] %vm45, %v44
  // Predicated region
  $region10: #{se_layer.2} parent=0 // pred_check
    _
  $region11: #{se_layer.2} parent=0 // pred_check_branch
    %51 = sbr.rel (0) target = $region13
  $region12: #{se_layer.2} parent=0 // pred_region
    _
  $region13: #{se_layer.2} parent=0 // pred_fallthru
    _
  // Predicated region
  $region14: #{se_layer.2} parent=0 // pred_check
    _
  $region15: #{se_layer.2} parent=0 // pred_check_branch
    %53 = sbr.rel (0) target = $region17
  $region16: #{se_layer.2} parent=0 // pred_region
    _
  $region17: #{se_layer.2} parent=0 // pred_fallthru
    _

// kernel: se_layer.3
$region0: #{se_layer.3}
  #allocation0 [shape = 'u32[]', space=smem, size = 0x4, offset = 0x4, fixed_abs, tag = 'smem constant byte address 0x4 - core index']
  #allocation1 [shape = 'u32[72,128]{1,0:T(1,128)}', space=vmem, size = 0x9000, scoped, tag = 'internal scratch']
  %s0 = inlined_call_operand.vmem [shape: f32[32,256], index: 0, kind: input, shape index: {}]
  %s1 = inlined_call_operand.vmem [shape: f32[32,1], index: 1, kind: input, shape index: {}]
  %s2 = inlined_call_operand.vmem [shape: f32[32,256], index: 2, kind: output, shape index: {}]
  %s3 = sld [smem:[#allocation0]]
  $region18: #{se_layer.3} parent=0
    _
  %s5 = ssub.s32 1, %s3
  %s6 = scalar_select 0, %s5, %s3
  // Predicated region
  $region2: #{se_layer.3} parent=0 // pred_check
    _
  $region3: #{se_layer.3} parent=0 // pred_check_branch
    %8 = sbr.rel (0) target = $region5
  $region4: #{se_layer.3} parent=0 // pred_region
    _
  $region5: #{se_layer.3} parent=0 // pred_fallthru
    _
  // Predicated region
  $region6: #{se_layer.3} parent=0 // pred_check
    _
  $region7: #{se_layer.3} parent=0 // pred_check_branch
    %10 = sbr.rel (0) target = $region9
  $region8: #{se_layer.3} parent=0 // pred_region
    _
  $region9: #{se_layer.3} parent=0 // pred_fallthru
    _
  %v11 = vld [vmem:[%s0] sm:$0xff]
  %v12 = vld [vmem:[%s0 + $0x8] sm:$0xff]
  %v13 = vld [vmem:[%s0 + $0x10] sm:$0xff]
  %v14 = vld [vmem:[%s0 + $0x18] sm:$0xff]
  %v15 = vld [vmem:[%s0 + $0x20] sm:$0xff]
  %v16 = vld [vmem:[%s0 + $0x28] sm:$0xff]
  %v17 = vld [vmem:[%s0 + $0x30] sm:$0xff]
  %v18 = vld [vmem:[%s0 + $0x38] sm:$0xff]
  %v19 = vld [vmem:[%s1] sm:$0xff]
  %v20 = vld [vmem:[%s1 + $0x8] sm:$0xff]
  %v21 = vld [vmem:[%s1 + $0x10] sm:$0xff]
  %v22 = vld [vmem:[%s1 + $0x18] sm:$0xff]
  %24 = vset.pattern.permute.xlu0 0
  %25 = vperm.xlu0 %24, %v19
  %v26 = vpop.permute.xlu0 %25
  %29 = vset.pattern.permute.xlu0 0
  %30 = vperm.xlu0 %29, %v20
  %v31 = vpop.permute.xlu0 %30
  %34 = vset.pattern.permute.xlu0 0
  %35 = vperm.xlu0 %34, %v21
  %v36 = vpop.permute.xlu0 %35
  %39 = vset.pattern.permute.xlu0 0
  %40 = vperm.xlu0 %39, %v22
  %v41 = vpop.permute.xlu0 %40
  %v43 = vmul.f32 %v11, %v26
  %v44 = vmul.f32 %v12, %v26
  %v45 = vmul.f32 %v13, %v31
  %v46 = vmul.f32 %v14, %v31
  %v47 = vmul.f32 %v15, %v36
  %v48 = vmul.f32 %v16, %v36
  %v49 = vmul.f32 %v17, %v41
  %v50 = vmul.f32 %v18, %v41
  %51 = vst [vmem:[%s2] sm:$0xff] %v43
  %52 = vst [vmem:[%s2 + $0x8] sm:$0xff] %v44
  %53 = vst [vmem:[%s2 + $0x10] sm:$0xff] %v45
  %54 = vst [vmem:[%s2 + $0x18] sm:$0xff] %v46
  %55 = vst [vmem:[%s2 + $0x20] sm:$0xff] %v47
  %56 = vst [vmem:[%s2 + $0x28] sm:$0xff] %v48
  %57 = vst [vmem:[%s2 + $0x30] sm:$0xff] %v49
  %58 = vst [vmem:[%s2 + $0x38] sm:$0xff] %v50
  // Predicated region
  $region10: #{se_layer.3} parent=0 // pred_check
    _
  $region11: #{se_layer.3} parent=0 // pred_check_branch
    %60 = sbr.rel (0) target = $region13
  $region12: #{se_layer.3} parent=0 // pred_region
    _
  $region13: #{se_layer.3} parent=0 // pred_fallthru
    _
  // Predicated region
  $region14: #{se_layer.3} parent=0 // pred_check
    _
  $region15: #{se_layer.3} parent=0 // pred_check_branch
    %62 = sbr.rel (0) target = $region17
  $region16: #{se_layer.3} parent=0 // pred_region
    _
  $region17: #{se_layer.3} parent=0 // pred_fallthru
    _

</llo_original>
